<compile_context>
chip_gen: v6e
topology: v6e:2x2x1
jax: 0.10.0
libtpu: 0.0.40
codegen_flags: <defaults>
</compile_context>

<pallas_src>
import jax
import jax.numpy as jnp
from jax.experimental import pallas as pl
from jax.experimental.pallas import tpu as pltpu


def _fused_kernel(ids_ref, w_ref, out_ref):
    """ids_ref: [seq * batch] int32 in SMEM  (row-major flatten of [seq, batch])
       w_ref:   [n_word, n_class] f32 in VMEM (= (emb @ W^T + bias) / seq)
       out_ref: [batch, n_class]  f32 in VMEM
    """
    batch, _ = out_ref.shape
    n_word = w_ref.shape[0]
    seq = ids_ref.shape[0] // batch

    # Lane iota over the vocabulary, plus per-example int32 row selectors
    # (precomputed once, outside the unrolled id loop).
    vocab = jax.lax.broadcasted_iota(jnp.int32, (batch, n_word), 1)
    rows = jax.lax.broadcasted_iota(jnp.int32, (batch, n_word), 0)
    row_ones = [jnp.where(rows == b, 1, 0).astype(jnp.int32) for b in range(batch)]

    # counts[b, w] = number of times word w appears in example b.
    # Built from SMEM scalar reads: each id splats via the scalar unit and is
    # compared against the lane iota on the VPU (no XLU traffic).
    counts = jnp.zeros((batch, n_word), dtype=jnp.int32)
    for s in range(seq):          # static -> fully unrolled
        for b in range(batch):    # static -> fully unrolled
            tok = ids_ref[s * batch + b]               # scalar SMEM read
            counts = counts + jnp.where(vocab == tok, row_ones[b], 0)

    # Single cast + single MXU matmul (mean divisor and bias already folded into
    # w_ref). w_ref is read only here to keep its live range minimal.
    out_ref[...] = jnp.dot(counts.astype(jnp.float32), w_ref[...],
                           preferred_element_type=jnp.float32)


def fuse_params(emb_table, lin_weight, lin_bias, seq_len):
    """Precompute the fused classifier matrix once and reuse it across calls.

    W_final = (emb_table @ lin_weight.T + bias) / seq_len, shape [n_word, n_class].
    The bias fold relies on every row of counts summing to seq_len, i.e. all ids
    lie in [0, n_word) and there is no padding mask (matches nn.Embedding +
    fixed-length mean of the reference module). Rebuild if seq_len changes.
    """
    w_final = (jnp.dot(emb_table, lin_weight.T, preferred_element_type=jnp.float32)
               + lin_bias.reshape(1, -1).astype(jnp.float32)) * (1.0 / seq_len)
    return w_final


def model_forward(ids, w_final):
    """ids: int32 [seq, batch] (pad_sequence layout). Returns [batch, n_class] f32."""
    seq, batch = ids.shape
    n_class = w_final.shape[1]

    # Row-major flatten is layout-preserving (no transpose / data movement);
    # ids_flat[s * batch + b] == ids[s, b].
    ids_flat = ids.reshape(-1)

    # Gridless call: at these sizes every operand is a handful of vregs / a few
    # SMEM words, so any grid would be pure per-step overhead.
    return pl.pallas_call(
        _fused_kernel,
        out_shape=jax.ShapeDtypeStruct((batch, n_class), jnp.float32),
        in_specs=[
            pl.BlockSpec(memory_space=pltpu.MemorySpace.SMEM),  # ids (scalars)
            pl.BlockSpec(memory_space=pltpu.MemorySpace.VMEM),  # fused table
        ],
        out_specs=pl.BlockSpec(memory_space=pltpu.MemorySpace.VMEM),
    )(ids_flat, w_final)


def reference_forward(ids, emb_table, lin_weight, lin_bias):
    x = emb_table[ids]                      # [seq, batch, n_hidden]
    h = jnp.mean(x, axis=0)                 # [batch, n_hidden]
    return h @ lin_weight.T + lin_bias      # [batch, n_class]


if __name__ == "__main__":
    # Model hyper-params (n_hidden fixed at 64 by the module).
    n_word, n_class, n_hidden = 50, 4, 64
    seq_len, batch = 8, 2

    key = jax.random.PRNGKey(0)
    k_emb, k_w, k_b, k_ids = jax.random.split(key, 4)

    # Deterministic synthetic parameters (shapes match nn.Embedding / nn.Linear).
    emb_table = jax.random.normal(k_emb, (n_word, n_hidden), dtype=jnp.float32)
    lin_weight = jax.random.normal(k_w, (n_class, n_hidden), dtype=jnp.float32) * 0.1
    lin_bias = jax.random.normal(k_b, (n_class,), dtype=jnp.float32) * 0.1

    # Token-id input: [seq_len, batch] (pad_sequence layout, batch_first=False).
    ids = jax.random.randint(k_ids, (seq_len, batch), 0, n_word, dtype=jnp.int32)

    # Fuse the static weights (including bias + mean divisor) once, then run.
    w_final = fuse_params(emb_table, lin_weight, lin_bias, seq_len)
    y = jax.block_until_ready(model_forward(ids, w_final))

    y_ref = reference_forward(ids, emb_table, lin_weight, lin_bias)
    assert y.shape == (batch, n_class)
    assert jnp.allclose(y, y_ref, atol=1e-4, rtol=1e-4), "mismatch vs reference"

    print("KERNEL_OK")
</pallas_src>

<mosaic_0001>
module attributes {stable_mosaic.version = 11 : i64} {
  func.func @_fused_kernel(%arg0: memref<16xi32, #tpu.memory_space<smem>>, %arg1: memref<50x4xf32, #tpu.memory_space<vmem>>, %arg2: memref<2x4xf32, #tpu.memory_space<vmem>>) attributes {dimension_semantics = [], scalar_prefetch = 0 : i64, scratch_operands = 0 : i64, tpu.core_type = #tpu.core_type<tc>} {
    %0 = tpu.iota {dimensions = array<i32: 1>} : vector<2x50xi32>
    %1 = tpu.iota {dimensions = array<i32: 0>} : vector<2x50xi32>
    %c0_i32 = arith.constant 0 : i32
    %2 = vector.broadcast %c0_i32 : i32 to vector<2x50xi32>
    %3 = arith.cmpi eq, %1, %2 : vector<2x50xi32>
    %c1_i32 = arith.constant 1 : i32
    %c0_i32_0 = arith.constant 0 : i32
    %4 = vector.broadcast %c1_i32 : i32 to vector<2x50xi32>
    %5 = vector.broadcast %c0_i32_0 : i32 to vector<2x50xi32>
    %6 = arith.select %3, %4, %5 : vector<2x50xi1>, vector<2x50xi32>
    %c1_i32_1 = arith.constant 1 : i32
    %7 = vector.broadcast %c1_i32_1 : i32 to vector<2x50xi32>
    %8 = arith.cmpi eq, %1, %7 : vector<2x50xi32>
    %c1_i32_2 = arith.constant 1 : i32
    %c0_i32_3 = arith.constant 0 : i32
    %9 = vector.broadcast %c1_i32_2 : i32 to vector<2x50xi32>
    %10 = vector.broadcast %c0_i32_3 : i32 to vector<2x50xi32>
    %11 = arith.select %8, %9, %10 : vector<2x50xi1>, vector<2x50xi32>
    %c0_i32_4 = arith.constant 0 : i32
    %12 = vector.broadcast %c0_i32_4 : i32 to vector<2x50xi32>
    %c0 = arith.constant 0 : index
    %13 = memref.load %arg0[%c0] : memref<16xi32, #tpu.memory_space<smem>>
    %14 = vector.broadcast %13 : i32 to vector<2x50xi32>
    %15 = arith.cmpi eq, %0, %14 : vector<2x50xi32>
    %c0_i32_5 = arith.constant 0 : i32
    %16 = vector.broadcast %c0_i32_5 : i32 to vector<2x50xi32>
    %17 = arith.select %15, %6, %16 : vector<2x50xi1>, vector<2x50xi32>
    %18 = arith.addi %12, %17 : vector<2x50xi32>
    %c1 = arith.constant 1 : index
    %19 = memref.load %arg0[%c1] : memref<16xi32, #tpu.memory_space<smem>>
    %20 = vector.broadcast %19 : i32 to vector<2x50xi32>
    %21 = arith.cmpi eq, %0, %20 : vector<2x50xi32>
    %c0_i32_6 = arith.constant 0 : i32
    %22 = vector.broadcast %c0_i32_6 : i32 to vector<2x50xi32>
    %23 = arith.select %21, %11, %22 : vector<2x50xi1>, vector<2x50xi32>
    %24 = arith.addi %18, %23 : vector<2x50xi32>
    %c2 = arith.constant 2 : index
    %25 = memref.load %arg0[%c2] : memref<16xi32, #tpu.memory_space<smem>>
    %26 = vector.broadcast %25 : i32 to vector<2x50xi32>
    %27 = arith.cmpi eq, %0, %26 : vector<2x50xi32>
    %c0_i32_7 = arith.constant 0 : i32
    %28 = vector.broadcast %c0_i32_7 : i32 to vector<2x50xi32>
    %29 = arith.select %27, %6, %28 : vector<2x50xi1>, vector<2x50xi32>
    %30 = arith.addi %24, %29 : vector<2x50xi32>
    %c3 = arith.constant 3 : index
    %31 = memref.load %arg0[%c3] : memref<16xi32, #tpu.memory_space<smem>>
    %32 = vector.broadcast %31 : i32 to vector<2x50xi32>
    %33 = arith.cmpi eq, %0, %32 : vector<2x50xi32>
    %c0_i32_8 = arith.constant 0 : i32
    %34 = vector.broadcast %c0_i32_8 : i32 to vector<2x50xi32>
    %35 = arith.select %33, %11, %34 : vector<2x50xi1>, vector<2x50xi32>
    %36 = arith.addi %30, %35 : vector<2x50xi32>
    %c4 = arith.constant 4 : index
    %37 = memref.load %arg0[%c4] : memref<16xi32, #tpu.memory_space<smem>>
    %38 = vector.broadcast %37 : i32 to vector<2x50xi32>
    %39 = arith.cmpi eq, %0, %38 : vector<2x50xi32>
    %c0_i32_9 = arith.constant 0 : i32
    %40 = vector.broadcast %c0_i32_9 : i32 to vector<2x50xi32>
    %41 = arith.select %39, %6, %40 : vector<2x50xi1>, vector<2x50xi32>
    %42 = arith.addi %36, %41 : vector<2x50xi32>
    %c5 = arith.constant 5 : index
    %43 = memref.load %arg0[%c5] : memref<16xi32, #tpu.memory_space<smem>>
    %44 = vector.broadcast %43 : i32 to vector<2x50xi32>
    %45 = arith.cmpi eq, %0, %44 : vector<2x50xi32>
    %c0_i32_10 = arith.constant 0 : i32
    %46 = vector.broadcast %c0_i32_10 : i32 to vector<2x50xi32>
    %47 = arith.select %45, %11, %46 : vector<2x50xi1>, vector<2x50xi32>
    %48 = arith.addi %42, %47 : vector<2x50xi32>
    %c6 = arith.constant 6 : index
    %49 = memref.load %arg0[%c6] : memref<16xi32, #tpu.memory_space<smem>>
    %50 = vector.broadcast %49 : i32 to vector<2x50xi32>
    %51 = arith.cmpi eq, %0, %50 : vector<2x50xi32>
    %c0_i32_11 = arith.constant 0 : i32
    %52 = vector.broadcast %c0_i32_11 : i32 to vector<2x50xi32>
    %53 = arith.select %51, %6, %52 : vector<2x50xi1>, vector<2x50xi32>
    %54 = arith.addi %48, %53 : vector<2x50xi32>
    %c7 = arith.constant 7 : index
    %55 = memref.load %arg0[%c7] : memref<16xi32, #tpu.memory_space<smem>>
    %56 = vector.broadcast %55 : i32 to vector<2x50xi32>
    %57 = arith.cmpi eq, %0, %56 : vector<2x50xi32>
    %c0_i32_12 = arith.constant 0 : i32
    %58 = vector.broadcast %c0_i32_12 : i32 to vector<2x50xi32>
    %59 = arith.select %57, %11, %58 : vector<2x50xi1>, vector<2x50xi32>
    %60 = arith.addi %54, %59 : vector<2x50xi32>
    %c8 = arith.constant 8 : index
    %61 = memref.load %arg0[%c8] : memref<16xi32, #tpu.memory_space<smem>>
    %62 = vector.broadcast %61 : i32 to vector<2x50xi32>
    %63 = arith.cmpi eq, %0, %62 : vector<2x50xi32>
    %c0_i32_13 = arith.constant 0 : i32
    %64 = vector.broadcast %c0_i32_13 : i32 to vector<2x50xi32>
    %65 = arith.select %63, %6, %64 : vector<2x50xi1>, vector<2x50xi32>
    %66 = arith.addi %60, %65 : vector<2x50xi32>
    %c9 = arith.constant 9 : index
    %67 = memref.load %arg0[%c9] : memref<16xi32, #tpu.memory_space<smem>>
    %68 = vector.broadcast %67 : i32 to vector<2x50xi32>
    %69 = arith.cmpi eq, %0, %68 : vector<2x50xi32>
    %c0_i32_14 = arith.constant 0 : i32
    %70 = vector.broadcast %c0_i32_14 : i32 to vector<2x50xi32>
    %71 = arith.select %69, %11, %70 : vector<2x50xi1>, vector<2x50xi32>
    %72 = arith.addi %66, %71 : vector<2x50xi32>
    %c10 = arith.constant 10 : index
    %73 = memref.load %arg0[%c10] : memref<16xi32, #tpu.memory_space<smem>>
    %74 = vector.broadcast %73 : i32 to vector<2x50xi32>
    %75 = arith.cmpi eq, %0, %74 : vector<2x50xi32>
    %c0_i32_15 = arith.constant 0 : i32
    %76 = vector.broadcast %c0_i32_15 : i32 to vector<2x50xi32>
    %77 = arith.select %75, %6, %76 : vector<2x50xi1>, vector<2x50xi32>
    %78 = arith.addi %72, %77 : vector<2x50xi32>
    %c11 = arith.constant 11 : index
    %79 = memref.load %arg0[%c11] : memref<16xi32, #tpu.memory_space<smem>>
    %80 = vector.broadcast %79 : i32 to vector<2x50xi32>
    %81 = arith.cmpi eq, %0, %80 : vector<2x50xi32>
    %c0_i32_16 = arith.constant 0 : i32
    %82 = vector.broadcast %c0_i32_16 : i32 to vector<2x50xi32>
    %83 = arith.select %81, %11, %82 : vector<2x50xi1>, vector<2x50xi32>
    %84 = arith.addi %78, %83 : vector<2x50xi32>
    %c12 = arith.constant 12 : index
    %85 = memref.load %arg0[%c12] : memref<16xi32, #tpu.memory_space<smem>>
    %86 = vector.broadcast %85 : i32 to vector<2x50xi32>
    %87 = arith.cmpi eq, %0, %86 : vector<2x50xi32>
    %c0_i32_17 = arith.constant 0 : i32
    %88 = vector.broadcast %c0_i32_17 : i32 to vector<2x50xi32>
    %89 = arith.select %87, %6, %88 : vector<2x50xi1>, vector<2x50xi32>
    %90 = arith.addi %84, %89 : vector<2x50xi32>
    %c13 = arith.constant 13 : index
    %91 = memref.load %arg0[%c13] : memref<16xi32, #tpu.memory_space<smem>>
    %92 = vector.broadcast %91 : i32 to vector<2x50xi32>
    %93 = arith.cmpi eq, %0, %92 : vector<2x50xi32>
    %c0_i32_18 = arith.constant 0 : i32
    %94 = vector.broadcast %c0_i32_18 : i32 to vector<2x50xi32>
    %95 = arith.select %93, %11, %94 : vector<2x50xi1>, vector<2x50xi32>
    %96 = arith.addi %90, %95 : vector<2x50xi32>
    %c14 = arith.constant 14 : index
    %97 = memref.load %arg0[%c14] : memref<16xi32, #tpu.memory_space<smem>>
    %98 = vector.broadcast %97 : i32 to vector<2x50xi32>
    %99 = arith.cmpi eq, %0, %98 : vector<2x50xi32>
    %c0_i32_19 = arith.constant 0 : i32
    %100 = vector.broadcast %c0_i32_19 : i32 to vector<2x50xi32>
    %101 = arith.select %99, %6, %100 : vector<2x50xi1>, vector<2x50xi32>
    %102 = arith.addi %96, %101 : vector<2x50xi32>
    %c15 = arith.constant 15 : index
    %103 = memref.load %arg0[%c15] : memref<16xi32, #tpu.memory_space<smem>>
    %104 = vector.broadcast %103 : i32 to vector<2x50xi32>
    %105 = arith.cmpi eq, %0, %104 : vector<2x50xi32>
    %c0_i32_20 = arith.constant 0 : i32
    %106 = vector.broadcast %c0_i32_20 : i32 to vector<2x50xi32>
    %107 = arith.select %105, %11, %106 : vector<2x50xi1>, vector<2x50xi32>
    %108 = arith.addi %102, %107 : vector<2x50xi32>
    %109 = arith.sitofp %108 : vector<2x50xi32> to vector<2x50xf32>
    %c0_21 = arith.constant 0 : index
    %c0_22 = arith.constant 0 : index
    %110 = vector.load %arg1[%c0_21, %c0_22] : memref<50x4xf32, #tpu.memory_space<vmem>>, vector<50x4xf32>
    %cst = arith.constant dense<0.000000e+00> : vector<2x4xf32>
    %111 = tpu.matmul %109, %110, %cst {dimension_numbers = #tpu.dot_dimension_numbers<[1], [0], [0], [1], [0, 0, 1, 1], [], []>} : vector<2x50xf32>, vector<50x4xf32>, vector<2x4xf32> -> vector<2x4xf32>
    %c0_23 = arith.constant 0 : index
    %c0_24 = arith.constant 0 : index
    %112 = vector.load %arg2[%c0_23, %c0_24] : memref<2x4xf32, #tpu.memory_space<vmem>>, vector<2x4xf32>
    tpu.vector_store %arg2[%c0_23, %c0_24], %111 {strides = array<i32>} : memref<2x4xf32, #tpu.memory_space<vmem>>, vector<2x4xf32>,
    return
  }
}

</mosaic_0001>

<llo_original>
// kernel: tpu_custom_call.1
$region0: #{tpu_custom_call.1}
  #allocation0 [shape = 'u32[]', space=smem, size = 0x4, offset = 0x4, fixed_abs, tag = 'smem constant byte address 0x4 - core index']
  #allocation1 [shape = 'u32[144,128]{1,0:T(1,128)}', space=vmem, size = 0x12000, scoped, tag = 'internal scratch']
  %s0 = inlined_call_operand.vmem [shape: s32[16], index: 0, kind: input, shape index: {}]
  %s1 = inlined_call_operand.vmem [shape: f32[50,4], index: 1, kind: input, shape index: {}]
  %s2 = inlined_call_operand.hbm [shape: f32[2,4], index: 2, kind: output, shape index: {}]
  %s3 = sld [smem:[#allocation0]]
  $region22: #{tpu_custom_call.1} parent=0
    _
  %s5 = ssub.s32 1, %s3
  %s6 = scalar_select 0, %s5, %s3
  $region1: #{tpu_custom_call.1} parent=0
    #allocation2 [shape = 'u8[512]{0}', space=smem, size = 0x200, scoped, tag = 'input window, operand 0, single buffered']
    #allocation3 [shape = 's32[1]{0}', space=sflag, size = 0x4, scoped, tag = 'scoped memory for tpu_custom_call.1']
    #allocation4 [shape = 's32[1]{0}', space=sflag, size = 0x4, scoped, tag = 'scoped memory for tpu_custom_call.1']
    #allocation5 [shape = 'u8[1024]{0}', space=vmem, size = 0x400, scoped, tag = 'output window, operand 0, single buffered']
    %7 = vsyncpa [#allocation4], 0
    %8 = vsyncpa [#allocation3], 0
    // Predicated region
    $region2: #{tpu_custom_call.1} parent=1 // pred_check
      _
    $region3: #{tpu_custom_call.1} parent=1 // pred_check_branch
      %10 = sbr.rel (0) target = $region5
    $region4: #{tpu_custom_call.1} parent=1 // pred_region
      %s12 = ssub.s32 16, 16
      %13 = vsyncadd [#allocation4], %s12
      %s15 = sshll.u32 %s0, 4
      %s16 = int_to_ptr.vmem [resolvable:$true] %s15
      %18 = dma.vmem_to_smem %s16, 16, [#allocation2], [#allocation4]
    $region5: #{tpu_custom_call.1} parent=1 // pred_fallthru
      _
    // Predicated region
    $region6: #{tpu_custom_call.1} parent=1 // pred_check
      _
    $region7: #{tpu_custom_call.1} parent=1 // pred_check_branch
      %20 = sbr.rel (0) target = $region9
    $region8: #{tpu_custom_call.1} parent=1 // pred_region
      _
    $region9: #{tpu_custom_call.1} parent=1 // pred_fallthru
      _
    // Predicated region
    $region10: #{tpu_custom_call.1} parent=1 // pred_check
      _
    $region11: #{tpu_custom_call.1} parent=1 // pred_check_branch
      %22 = sbr.rel (0) target = $region13
    $region12: #{tpu_custom_call.1} parent=1 // pred_region
      %23 = dma.done [#allocation4], 16
    $region13: #{tpu_custom_call.1} parent=1 // pred_fallthru
      _
    %24 = sfence
    %v25 = vlaneseq
    %v26 = vand.u32 %v25, 127
    %v27 = vlaneseq
    %v28 = vshrl.u32 %v27, 7
    %vm29 = vcmp.eq.s32.totalorder %v28, 0
    %v30 = vsel %vm29, 1, 0
    %vm31 = vcmp.eq.s32.totalorder %v28, 1
    %v32 = vsel %vm31, 1, 0
    %s33 = sld [smem:[#allocation2]]
    %v34 = vstv %s33
    %vm35 = vcmp.eq.s32.totalorder %v26, %v34
    %v36 = vsel %vm35, %v30, 0
    %s37 = sld [smem:[#allocation2 + $0x1]]
    %v38 = vstv %s37
    %vm39 = vcmp.eq.s32.totalorder %v26, %v38
    %v40 = vsel %vm39, %v32, 0
    %v41 = vadd.s32 %v36, %v40
    %s42 = sld [smem:[#allocation2 + $0x2]]
    %v43 = vstv %s42
    %vm44 = vcmp.eq.s32.totalorder %v26, %v43
    %v45 = vsel %vm44, %v30, 0
    %v46 = vadd.s32 %v41, %v45
    %s47 = sld [smem:[#allocation2 + $0x3]]
    %v48 = vstv %s47
    %vm49 = vcmp.eq.s32.totalorder %v26, %v48
    %v50 = vsel %vm49, %v32, 0
    %v51 = vadd.s32 %v46, %v50
    %s52 = sld [smem:[#allocation2 + $0x4]]
    %v53 = vstv %s52
    %vm54 = vcmp.eq.s32.totalorder %v26, %v53
    %v55 = vsel %vm54, %v30, 0
    %v56 = vadd.s32 %v51, %v55
    %s57 = sld [smem:[#allocation2 + $0x5]]
    %v58 = vstv %s57
    %vm59 = vcmp.eq.s32.totalorder %v26, %v58
    %v60 = vsel %vm59, %v32, 0
    %v61 = vadd.s32 %v56, %v60
    %s62 = sld [smem:[#allocation2 + $0x6]]
    %v63 = vstv %s62
    %vm64 = vcmp.eq.s32.totalorder %v26, %v63
    %v65 = vsel %vm64, %v30, 0
    %v66 = vadd.s32 %v61, %v65
    %s67 = sld [smem:[#allocation2 + $0x7]]
    %v68 = vstv %s67
    %vm69 = vcmp.eq.s32.totalorder %v26, %v68
    %v70 = vsel %vm69, %v32, 0
    %v71 = vadd.s32 %v66, %v70
    %s72 = sld [smem:[#allocation2 + $0x8]]
    %v73 = vstv %s72
    %vm74 = vcmp.eq.s32.totalorder %v26, %v73
    %v75 = vsel %vm74, %v30, 0
    %v76 = vadd.s32 %v71, %v75
    %s77 = sld [smem:[#allocation2 + $0x9]]
    %v78 = vstv %s77
    %vm79 = vcmp.eq.s32.totalorder %v26, %v78
    %v80 = vsel %vm79, %v32, 0
    %v81 = vadd.s32 %v76, %v80
    %s82 = sld [smem:[#allocation2 + $0xa]]
    %v83 = vstv %s82
    %vm84 = vcmp.eq.s32.totalorder %v26, %v83
    %v85 = vsel %vm84, %v30, 0
    %v86 = vadd.s32 %v81, %v85
    %s87 = sld [smem:[#allocation2 + $0xb]]
    %v88 = vstv %s87
    %vm89 = vcmp.eq.s32.totalorder %v26, %v88
    %v90 = vsel %vm89, %v32, 0
    %v91 = vadd.s32 %v86, %v90
    %s92 = sld [smem:[#allocation2 + $0xc]]
    %v93 = vstv %s92
    %vm94 = vcmp.eq.s32.totalorder %v26, %v93
    %v95 = vsel %vm94, %v30, 0
    %v96 = vadd.s32 %v91, %v95
    %s97 = sld [smem:[#allocation2 + $0xd]]
    %v98 = vstv %s97
    %vm99 = vcmp.eq.s32.totalorder %v26, %v98
    %v100 = vsel %vm99, %v32, 0
    %v101 = vadd.s32 %v96, %v100
    %s102 = sld [smem:[#allocation2 + $0xe]]
    %v103 = vstv %s102
    %vm104 = vcmp.eq.s32.totalorder %v26, %v103
    %v105 = vsel %vm104, %v30, 0
    %v106 = vadd.s32 %v101, %v105
    %s107 = sld [smem:[#allocation2 + $0xf]]
    %v108 = vstv %s107
    %vm109 = vcmp.eq.s32.totalorder %v26, %v108
    %v110 = vsel %vm109, %v32, 0
    %v111 = vadd.s32 %v106, %v110
    %v112 = vcvt.s32.f32 %v111
    %v113 = vld [vmem:[%s1] sm:$0xff]
    %v114 = vld [vmem:[%s1 + $0x8] sm:$0xff]
    %v115 = vld [vmem:[%s1 + $0x10] sm:$0xff]
    %v116 = vld [vmem:[%s1 + $0x18] sm:$0xff]
    %v117 = vld [vmem:[%s1 + $0x20] sm:$0xff]
    %v118 = vld [vmem:[%s1 + $0x28] sm:$0xff]
    %v119 = vld [vmem:[%s1 + $0x30] sm:$0x3]
    %vm120 = vcmask 408576
    %v122 = vsel %vm120, %v112, 0
    %vm124 = vcmask 1041408
    %v126 = vsel %vm124, %v119, 0
    %128 = vmatprep.subr.mxu0 0.0
    %129 = vmatpush1.msra.mxu0 0.0
    %130 = vmatprep.subr.mxu0 0.0
    %131 = vmatpush1.msra.mxu0 0.0
    %132 = vmatprep.subr.mxu0 0.0
    %133 = vmatpush1.msra.mxu0 0.0
    %134 = vmatprep.subr.mxu0 0.0
    %135 = vmatpush1.msra.mxu0 0.0
    %136 = vmatprep.subr.mxu0 0.0
    %137 = vmatpush1.msra.mxu0 0.0
    %138 = vmatprep.subr.mxu0 0.0
    %139 = vmatpush1.msra.mxu0 0.0
    %140 = vmatprep.subr.mxu0 0.0
    %141 = vmatpush1.msra.mxu0 0.0
    %142 = vmatprep.subr.mxu0 0.0
    %143 = vmatpush1.msra.mxu0 0.0
    %144 = vmatprep.subr.mxu0 0.0
    %145 = vmatpush1.msra.mxu0 0.0
    %146 = vmatprep.subr.mxu0 0.0
    %147 = vmatpush1.msra.mxu0 %v126
    %148 = vmatprep.subr.mxu0 0.0
    %149 = vmatpush1.msra.mxu0 %v118
    %150 = vmatprep.subr.mxu0 0.0
    %151 = vmatpush1.msra.mxu0 %v117
    %152 = vmatprep.subr.mxu0 0.0
    %153 = vmatpush1.msra.mxu0 %v116
    %154 = vmatprep.subr.mxu0 0.0
    %155 = vmatpush1.msra.mxu0 %v115
    %156 = vmatprep.subr.mxu0 0.0
    %157 = vmatpush1.msra.mxu0 %v114
    %158 = vmatprep.subr.mxu0 0.0
    %159 = vmatpush1.msra.mxu0 %v113
    %160 = vmatprep.subr.mxu0 0.0
    %161 = vmatpush2.msra.mxu0 0.0
    %162 = vmatprep.subr.mxu0 0.0
    %163 = vmatpush2.msra.mxu0 0.0
    %164 = vmatprep.subr.mxu0 0.0
    %165 = vmatpush2.msra.mxu0 0.0
    %166 = vmatprep.subr.mxu0 0.0
    %167 = vmatpush2.msra.mxu0 0.0
    %168 = vmatprep.subr.mxu0 0.0
    %169 = vmatpush2.msra.mxu0 0.0
    %170 = vmatprep.subr.mxu0 0.0
    %171 = vmatpush2.msra.mxu0 0.0
    %172 = vmatprep.subr.mxu0 0.0
    %173 = vmatpush2.msra.mxu0 0.0
    %174 = vmatprep.subr.mxu0 0.0
    %175 = vmatpush2.msra.mxu0 0.0
    %176 = vmatprep.subr.mxu0 0.0
    %177 = vmatpush2.msra.mxu0 0.0
    %178 = vmatprep.subr.mxu0 0.0
    %179 = vmatpush2.msra.mxu0 0.0
    %180 = vmatprep.subr.mxu0 0.0
    %181 = vmatpush2.msra.mxu0 0.0
    %182 = vmatprep.subr.mxu0 0.0
    %183 = vmatpush2.msra.mxu0 0.0
    %184 = vmatprep.subr.mxu0 0.0
    %185 = vmatpush2.msra.mxu0 0.0
    %186 = vmatprep.subr.mxu0 0.0
    %187 = vmatpush2.msra.mxu0 0.0
    %188 = vmatprep.subr.mxu0 0.0
    %189 = vmatpush2.msra.mxu0 0.0
    %190 = vmatprep.subr.mxu0 0.0
    %191 = vmatpush2.msra.mxu0 0.0
    %192 = vmatprep.mubr.f32.mxu0 0.0
    %193 = vmatmul.mubr.f32.gmra.mxu0 %v122
    %v194 = vpop.f32.mrf.mxu0
    %v195 = vadd.f32 0.0, %v194
    %v196 = vpop.f32.mrf.mxu0
    %197 = vdwg.mxu0
    %vm198 = vcmask 25600
    %199 = vst.msk [vmem:[#allocation5] sm:$0x3] %vm198, %v195
    // Predicated region
    $region14: #{tpu_custom_call.1} parent=1 // pred_check
      _
    $region15: #{tpu_custom_call.1} parent=1 // pred_check_branch
      %201 = sbr.rel (0) target = $region17
    $region16: #{tpu_custom_call.1} parent=1 // pred_region
      %s203 = ssub.s32 32, 32
      %204 = vsyncadd [#allocation3], %s203
      %s206 = sshll.u32 [#allocation5], 4
      %s207 = int_to_ptr.vmem [resolvable:$true] %s206
      %209 = dma.vmem_to_hbm [thread:$0]  %s207, 32, %s2, [#allocation3]
    $region17: #{tpu_custom_call.1} parent=1 // pred_fallthru
      _
    // Predicated region
    $region18: #{tpu_custom_call.1} parent=1 // pred_check
      _
    $region19: #{tpu_custom_call.1} parent=1 // pred_check_branch
      %211 = sbr.rel (0) target = $region21
    $region20: #{tpu_custom_call.1} parent=1 // pred_region
      %212 = dma.done [#allocation3], 32
    $region21: #{tpu_custom_call.1} parent=1 // pred_fallthru
      _
    %213 = vsyncpa [#allocation3], 1
    %214 = vsyncpa [#allocation4], 1

</llo_original>
